<compile_context>
chip_gen: v6e
topology: v6e:2x2x1
jax: 0.10.0
libtpu: 0.0.40
codegen_flags: <defaults>
</compile_context>

<pallas_src>
import functools

import jax
import jax.numpy as jnp
from jax.experimental import pallas as pl
from jax.experimental.pallas import tpu as pltpu


# ---------------------------------------------------------------------------
# Kernel 1: row-tiled linear projection  xp = x @ W
# ---------------------------------------------------------------------------
def _linear_kernel(x_ref, w_ref, out_ref):
    x = x_ref[...].astype(jnp.bfloat16)
    w = w_ref[...].astype(jnp.bfloat16)
    out_ref[...] = jnp.dot(x, w, preferred_element_type=jnp.float32)


def _project(x, w, *, tile_n):
    n, f_in = x.shape
    f_out = w.shape[1]
    if n % tile_n != 0 or tile_n > n:
        tile_n = n
    return pl.pallas_call(
        _linear_kernel,
        out_shape=jax.ShapeDtypeStruct((n, f_out), jnp.float32),
        grid=(n // tile_n,),
        in_specs=[
            pl.BlockSpec((tile_n, f_in), lambda i: (i, 0)),
            pl.BlockSpec((f_in, f_out), lambda i: (0, 0)),
        ],
        out_specs=pl.BlockSpec((tile_n, f_out), lambda i: (i, 0)),
        compiler_params=pltpu.CompilerParams(
            dimension_semantics=("parallel",),
            vmem_limit_bytes=32 * 1024 * 1024),
    )(x, w)


# ---------------------------------------------------------------------------
# Kernel 2: attention + aggregation (+ fused activation), tiled over dst rows
# ---------------------------------------------------------------------------
def _gat_attention_kernel(xp_ref, att_src_ref, att_dst_ref, bias_ref, adj_ref,
                          out_ref, *, heads, out_ch, tile_n, activation):
    i = pl.program_id(0)
    hc = heads * out_ch
    neg_inf = jnp.float32(-1e30)

    xp = xp_ref[...]                                    # [N, H*C] f32 (all source nodes)
    xp_bf = xp.astype(jnp.bfloat16)

    # Destination-node rows handled by this grid step.
    row0 = pl.multiple_of(i * tile_n, tile_n)
    xp_dst = xp_ref[pl.ds(row0, tile_n), :]             # [T, H*C]

    # Edge mask for this destination tile: adj[i, j] != 0  <=>  edge j -> i.
    edge = adj_ref[...].astype(jnp.float32) > 0.0       # [T, N]

    # All heads' attention coefficients in two block-structured matmuls:
    #   a_srcT[h, j] = sum_c att_src[h, c] * xp[j, h*C + c]     (src nodes on lanes)
    #   a_dst [t, h] = sum_c att_dst[h, c] * xp_dst[t, h*C + c] (dst nodes on sublanes)
    a_srcT = jax.lax.dot_general(
        att_src_ref[...], xp, (((1,), (1,)), ((), ())),
        preferred_element_type=jnp.float32)              # [H, N]
    a_dst = jnp.dot(xp_dst, att_dst_ref[...],
                    preferred_element_type=jnp.float32)  # [T, H]

    if heads > 1:
        col = jax.lax.broadcasted_iota(jnp.int32, (tile_n, hc), 1)
        head_of_col = col // out_ch                      # which head owns each column

    acc = jnp.zeros((tile_n, hc), jnp.float32)
    for h in range(heads):                               # unrolled at trace time
        e = a_dst[:, h:h + 1] + a_srcT[h:h + 1, :]       # [T, N]
        e = jnp.where(e > 0, e, 0.2 * e)                 # LeakyReLU(0.2)
        e = jnp.where(edge, e, neg_inf)                  # mask non-edges
        m = jnp.max(e, axis=-1, keepdims=True)           # finite: self-loops present
        p = jnp.exp(e - m)                               # masked entries underflow to 0
        s = jnp.sum(p, axis=-1, keepdims=True)
        inv_s = pl.reciprocal(s, approx=True)            # softmax denom on the EUP

        # Un-normalized aggregation over ALL feature columns (lane-dense MXU matmul);
        # normalization deferred to the [T, H*C] result (not the [T, N] weights).
        agg = jnp.dot(p.astype(jnp.bfloat16), xp_bf,
                      preferred_element_type=jnp.float32)  # [T, H*C]
        if heads == 1:
            acc = agg * inv_s
        else:
            # Head h contributes only its own columns -> implicit concat, no lane concat.
            acc = acc + jnp.where(head_of_col == h, agg * inv_s, 0.0)

    out = acc + bias_ref[...]

    if activation == "elu":
        out = jnp.where(out > 0, out, jnp.exp(jnp.minimum(out, 0.0)) - 1.0)
    elif activation == "log_softmax":
        m2 = jnp.max(out, axis=-1, keepdims=True)
        z = out - m2
        lse = jnp.log(jnp.sum(jnp.exp(z), axis=-1, keepdims=True))
        out = z - lse

    out_ref[...] = out


def _head_block(att, heads, out_ch):
    """[H, C] -> [H, H*C]: row h carries att[h] in columns h*C:(h+1)*C, zeros elsewhere."""
    eye = jnp.eye(heads, dtype=att.dtype)
    return (eye[:, :, None] * att[None, :, :]).reshape(heads, heads * out_ch)


def gat_layer(x, w, att_src, att_dst, bias, adj, *, heads, out_ch, concat,
              activation, tile_n=128):
    n = x.shape[0]
    hc = heads * out_ch
    if not concat and heads != 1:
        raise NotImplementedError("concat=False only supported for heads == 1")
    d_out = hc if concat else out_ch

    if n % tile_n != 0 or tile_n > n:
        tile_n = n

    # 1) projection xp = x @ W (row-tiled, lane-dense [N, H*C] output).
    xp = _project(x, w, tile_n=tile_n)

    # 2) block-structured attention weights so all heads reduce in one matmul each.
    att_src_rows = _head_block(att_src, heads, out_ch)          # [H, H*C]
    att_dst_cols = _head_block(att_dst, heads, out_ch).T        # [H*C, H]

    kernel = functools.partial(_gat_attention_kernel, heads=heads, out_ch=out_ch,
                               tile_n=tile_n, activation=activation)

    return pl.pallas_call(
        kernel,
        out_shape=jax.ShapeDtypeStruct((n, d_out), jnp.float32),
        grid=(n // tile_n,),
        in_specs=[
            pl.BlockSpec((n, hc), lambda i: (0, 0)),            # xp (all source nodes)
            pl.BlockSpec((heads, hc), lambda i: (0, 0)),        # att_src rows [H, H*C]
            pl.BlockSpec((hc, heads), lambda i: (0, 0)),        # att_dst cols [H*C, H]
            pl.BlockSpec((1, d_out), lambda i: (0, 0)),         # bias
            pl.BlockSpec((tile_n, n), lambda i: (i, 0)),        # adj dst-row tile (int8)
        ],
        out_specs=pl.BlockSpec((tile_n, d_out), lambda i: (i, 0)),
        compiler_params=pltpu.CompilerParams(
            dimension_semantics=("parallel",),
            vmem_limit_bytes=32 * 1024 * 1024),
    )(xp, att_src_rows, att_dst_cols, bias, adj)


def gat_forward(x, adj, params, *, hidden_dim, out_dim, heads, tile_n=128):
    # F.dropout (features + attention) is identity in eval mode.
    h = gat_layer(x, params["w1"], params["att_src1"], params["att_dst1"],
                  params["b1"], adj, heads=heads, out_ch=hidden_dim,
                  concat=True, activation="elu", tile_n=tile_n)
    y = gat_layer(h, params["w2"], params["att_src2"], params["att_dst2"],
                  params["b2"], adj, heads=1, out_ch=out_dim,
                  concat=False, activation="log_softmax", tile_n=tile_n)
    return y


def init_params(key, in_dim, hidden_dim, out_dim, heads):
    k1, k2, k3, k4, k5, k6 = jax.random.split(key, 6)

    def glorot(k, shape):
        fan_in, fan_out = shape[0], shape[-1]
        lim = (6.0 / (fan_in + fan_out)) ** 0.5
        return jax.random.uniform(k, shape, jnp.float32, -lim, lim)

    return {
        "w1": glorot(k1, (in_dim, heads * hidden_dim)),
        "att_src1": glorot(k2, (heads, hidden_dim)),
        "att_dst1": glorot(k3, (heads, hidden_dim)),
        "b1": jnp.zeros((1, heads * hidden_dim), jnp.float32),
        "w2": glorot(k4, (heads * hidden_dim, out_dim)),
        "att_src2": glorot(k5, (1, out_dim)),
        "att_dst2": glorot(k6, (1, out_dim)),
        "b2": jnp.zeros((1, out_dim), jnp.float32),
    }


if __name__ == "__main__":
    N, in_dim, hidden_dim, out_dim, heads = 128, 16, 8, 7, 8
    tile_n = 64    # 2 destination-row tiles -> exercises the parallel grid

    key = jax.random.PRNGKey(0)
    kx, kadj, kp = jax.random.split(key, 3)

    x = jax.random.normal(kx, (N, in_dim), jnp.float32)

    # Deterministic random graph; adj[dst, src] = 1 if edge src->dst.
    # PyG GATConv adds self-loops by default -> force diagonal to 1.
    # Stored as int8 (1 byte/entry) to cut adjacency HBM traffic 4x vs f32.
    adj = jax.random.uniform(kadj, (N, N)) < 0.10
    adj = jnp.logical_or(adj, jnp.eye(N, dtype=bool)).astype(jnp.int8)

    params = init_params(kp, in_dim, hidden_dim, out_dim, heads)

    out = gat_forward(x, adj, params, hidden_dim=hidden_dim, out_dim=out_dim,
                      heads=heads, tile_n=tile_n)
    out = jax.block_until_ready(out)

    assert out.shape == (N, out_dim)
    print("KERNEL_OK")
</pallas_src>

<mosaic_0001>
module attributes {stable_mosaic.version = 11 : i64} {
  func.func @_linear_kernel(%arg0: i32, %arg1: memref<64x16xf32, #tpu.memory_space<vmem>>, %arg2: memref<16x64xf32, #tpu.memory_space<vmem>>, %arg3: memref<64x64xf32, #tpu.memory_space<vmem>>) attributes {dimension_semantics = [#tpu.dimension_semantics<parallel>], iteration_bounds = array<i64: 2>, scalar_prefetch = 0 : i64, scratch_operands = 0 : i64, tpu.core_type = #tpu.core_type<tc>, window_params = [{transform_indices = @transform_0, window_bounds = array<i64: 64, 16>}, {pipeline_mode = #tpu.pipeline_mode<synchronous>, transform_indices = @transform_1, window_bounds = array<i64: 16, 64>}, {transform_indices = @transform_2, window_bounds = array<i64: 64, 64>}]} {
    %c0 = arith.constant 0 : index
    %c0_0 = arith.constant 0 : index
    %0 = vector.load %arg1[%c0, %c0_0] : memref<64x16xf32, #tpu.memory_space<vmem>>, vector<64x16xf32>
    %1 = arith.truncf %0 : vector<64x16xf32> to vector<64x16xbf16>
    %c0_1 = arith.constant 0 : index
    %c0_2 = arith.constant 0 : index
    %2 = vector.load %arg2[%c0_1, %c0_2] : memref<16x64xf32, #tpu.memory_space<vmem>>, vector<16x64xf32>
    %3 = arith.truncf %2 : vector<16x64xf32> to vector<16x64xbf16>
    %cst = arith.constant dense<0.000000e+00> : vector<64x64xf32>
    %4 = tpu.matmul %1, %3, %cst {dimension_numbers = #tpu.dot_dimension_numbers<[1], [0], [0], [1], [0, 0, 1, 1], [], []>} : vector<64x16xbf16>, vector<16x64xbf16>, vector<64x64xf32> -> vector<64x64xf32>
    %c0_3 = arith.constant 0 : index
    %c0_4 = arith.constant 0 : index
    %5 = vector.load %arg3[%c0_3, %c0_4] : memref<64x64xf32, #tpu.memory_space<vmem>>, vector<64x64xf32>
    tpu.vector_store %arg3[%c0_3, %c0_4], %4 {strides = array<i32>} : memref<64x64xf32, #tpu.memory_space<vmem>>, vector<64x64xf32>,
    return
  }
  func.func @transform_0(%arg0: i32) -> (i32, i32) {
    %c0_i32 = arith.constant 0 : i32
    %c0_i32_0 = arith.constant 0 : i32
    return %arg0, %c0_i32 : i32, i32
  }
  func.func @transform_1(%arg0: i32) -> (i32, i32) {
    %c0_i32 = arith.constant 0 : i32
    %c0_i32_0 = arith.constant 0 : i32
    %c0_i32_1 = arith.constant 0 : i32
    return %c0_i32, %c0_i32_0 : i32, i32
  }
  func.func @transform_2(%arg0: i32) -> (i32, i32) {
    %c0_i32 = arith.constant 0 : i32
    %c0_i32_0 = arith.constant 0 : i32
    return %arg0, %c0_i32 : i32, i32
  }
}

</mosaic_0001>

<llo_original>
// kernel: tpu_custom_call.1
$region0: #{tpu_custom_call.1}
  #allocation0 [shape = 'u32[]', space=smem, size = 0x4, offset = 0x4, fixed_abs, tag = 'smem constant byte address 0x4 - core index']
  #allocation1 [shape = 'u32[144,128]{1,0:T(1,128)}', space=vmem, size = 0x12000, scoped, tag = 'internal scratch']
  %s0 = inlined_call_operand.vmem [shape: f32[128,16], index: 0, kind: input, shape index: {}]
  %s1 = inlined_call_operand.vmem [shape: f32[16,64], index: 1, kind: input, shape index: {}]
  %s2 = inlined_call_operand.vmem [shape: f32[128,64], index: 2, kind: output, shape index: {}]
  %s3 = sld [smem:[#allocation0]]
  $region41: #{tpu_custom_call.1} parent=0
    _
  %s5 = ssub.s32 1, %s3
  %s6 = scalar_select 0, %s5, %s3
  loop: start=0, step=1, limit=4
  $region2: #{tpu_custom_call.1} parent=0 // loop_pre_header
    _
  $region3: #{tpu_custom_call.1} parent=0 // loop_header
    %s8 = sphi 0, %s12
    %p9 = scmp.ge.s32.totalorder %s8, 4
    %s18 = sphi 0, %s20
    %s21 = sphi 0, %s18
    %s22 = sphi 0, %s21
    %s38 = sphi 0, %s22
    %s42 = sphi 0, %s42
    %s44 = sphi 0, %s42
    %s45 = sphi 0, %s44
    %s59 = sphi 0, %s45
    %s65 = sphi 0, %s67
    %s68 = sphi 0, %s65
    %s69 = sphi 0, %s68
    %s85 = sphi 0, %s69
  $region4: #{tpu_custom_call.1} parent=0 // loop_header_branch
    %11 = sbr.rel (%p9) target = $region8
  $region5: #{tpu_custom_call.1} parent=0 // loop_body
    %s13 = ssub.s32 %s8, 1
    %s14 = ssub.s32 %s8, 2
    %s15 = sadd.s32 %s8, 1
    %s16 = ssub.s32 %s8, %s15
    %p17 = scmp.eq.s32.totalorder %s16, 0
    %s19 = sadd.s32 %s18, 1
    %s20 = scalar_select %p17, %s18, %s19
    %p23 = pneg %p17
    %p24 = scmp.eq.s32.totalorder %s8, 1
    %p25 = por %p23, %p24
    %p26 = scmp.ne.s32.totalorder %s18, %s21
    %p27 = scmp.eq.s32.totalorder %s8, 0
    %p28 = por %p26, %p27
    %p29 = scmp.ne.s32.totalorder %s18, %s21
    %p30 = scmp.eq.s32.totalorder %s13, 1
    %p31 = por %p29, %p30
    %p32 = scmp.ne.s32.totalorder %s21, %s22
    %p33 = scmp.eq.s32.totalorder %s13, 0
    %p34 = por %p32, %p33
    %p35 = scmp.ne.s32.totalorder %s21, %s22
    %p36 = scmp.eq.s32.totalorder %s14, 1
    %p37 = por %p35, %p36
    %p39 = scmp.ne.s32.totalorder %s22, %s38
    %p40 = scmp.eq.s32.totalorder %s14, 0
    %p41 = por %p39, %p40
    %s43 = sadd.s32 %s42, 1
    %p46 = scmp.eq.s32.totalorder %s8, 1
    %p47 = scmp.ne.s32.totalorder %s42, %s44
    %p48 = scmp.eq.s32.totalorder %s8, 0
    %p49 = por %p47, %p48
    %p50 = scmp.ne.s32.totalorder %s42, %s44
    %p51 = scmp.eq.s32.totalorder %s13, 1
    %p52 = por %p50, %p51
    %p53 = scmp.ne.s32.totalorder %s44, %s45
    %p54 = scmp.eq.s32.totalorder %s13, 0
    %p55 = por %p53, %p54
    %p56 = scmp.ne.s32.totalorder %s44, %s45
    %p57 = scmp.eq.s32.totalorder %s14, 1
    %p58 = por %p56, %p57
    %p60 = scmp.ne.s32.totalorder %s45, %s59
    %p61 = scmp.eq.s32.totalorder %s14, 0
    %p62 = por %p60, %p61
    %s63 = ssub.s32 %s8, %s15
    %p64 = scmp.eq.s32.totalorder %s63, 0
    %s66 = sadd.s32 %s65, 1
    %s67 = scalar_select %p64, %s65, %s66
    %p70 = pneg %p64
    %p71 = scmp.eq.s32.totalorder %s8, 1
    %p72 = por %p70, %p71
    %p73 = scmp.ne.s32.totalorder %s65, %s68
    %p74 = scmp.eq.s32.totalorder %s8, 0
    %p75 = por %p73, %p74
    %p76 = scmp.ne.s32.totalorder %s65, %s68
    %p77 = scmp.eq.s32.totalorder %s13, 1
    %p78 = por %p76, %p77
    %p79 = scmp.ne.s32.totalorder %s68, %s69
    %p80 = scmp.eq.s32.totalorder %s13, 0
    %p81 = por %p79, %p80
    %p82 = scmp.ne.s32.totalorder %s68, %s69
    %p83 = scmp.eq.s32.totalorder %s14, 1
    %p84 = por %p82, %p83
    %p86 = scmp.ne.s32.totalorder %s69, %s85
    %p87 = scmp.eq.s32.totalorder %s14, 0
    %p88 = por %p86, %p87
    %p89 = scmp.le.s32.totalorder 1, %s8
    %p90 = scmp.lt.s32.totalorder %s8, 3
    %p91 = pnand %p89, %p90
    %p92 = pneg %p91
    // Predicated region
    $region9: #{tpu_custom_call.1} parent=5 // pred_check
      _
    $region10: #{tpu_custom_call.1} parent=5 // pred_check_branch
      %94 = sbr.rel (%p91) target = $region12
    $region11: #{tpu_custom_call.1} parent=5 // pred_region
      %s95 = ssub.s32 %s8, 1
      // Predicated region
      $region13: #{tpu_custom_call.1} parent=11 // pred_check
        %p96 = pneg %p55
      $region14: #{tpu_custom_call.1} parent=11 // pred_check_branch
        %98 = sbr.rel (%p96) target = $region16
      $region15: #{tpu_custom_call.1} parent=11 // pred_region
        _
      $region16: #{tpu_custom_call.1} parent=11 // pred_fallthru
        _
    $region12: #{tpu_custom_call.1} parent=5 // pred_fallthru
      _
    %p99 = scmp.lt.s32.totalorder %s8, 2
    // Predicated region
    $region17: #{tpu_custom_call.1} parent=5 // pred_check
      %p100 = pneg %p99
    $region18: #{tpu_custom_call.1} parent=5 // pred_check_branch
      %102 = sbr.rel (%p100) target = $region20
    $region19: #{tpu_custom_call.1} parent=5 // pred_region
      // Predicated region
      $region21: #{tpu_custom_call.1} parent=19 // pred_check
        %p103 = pneg %p28
      $region22: #{tpu_custom_call.1} parent=19 // pred_check_branch
        %105 = sbr.rel (%p103) target = $region24
      $region23: #{tpu_custom_call.1} parent=19 // pred_region
        %s106 = smul.u32 8, %s8
        %p107 = scmp.lt.s32.totalorder %s106, 15
        %s108 = scalar_select %p107, %s106, 15
        %s109 = smul.addr %s108, 8
        %s110 = scalar_lea.vmem %s0, %s109
        %s111 = smul.u32 8, %s8
      $region24: #{tpu_custom_call.1} parent=19 // pred_fallthru
        _
    $region20: #{tpu_custom_call.1} parent=5 // pred_fallthru
      _
    %p112 = scmp.le.s32.totalorder 1, %s8
    %p113 = scmp.lt.s32.totalorder %s8, 3
    %p114 = pnand %p112, %p113
    %p115 = pneg %p114
    // Predicated region
    $region25: #{tpu_custom_call.1} parent=5 // pred_check
      _
    $region26: #{tpu_custom_call.1} parent=5 // pred_check_branch
      %117 = sbr.rel (%p114) target = $region28
    $region27: #{tpu_custom_call.1} parent=5 // pred_region
      %s118 = ssub.s32 %s8, 1
      %s119 = smul.u32 8, %s13
      %p120 = scmp.lt.s32.totalorder %s119, 15
      %s121 = scalar_select %p120, %s119, 15
      %s122 = smul.addr %s121, 8
      %s123 = scalar_lea.vmem %s0, %s122
      %p124 = pneg %p34
      %p125 = pneg %p31
      %p126 = pneg %p55
      %p127 = pneg %p52
      %p128 = pneg %p81
      %p129 = pneg %p78
      %s130 = smul.u32 8, %s13
      %p131 = scmp.lt.s32.totalorder %s130, 15
      %s132 = scalar_select %p131, %s130, 15
      %s133 = smul.addr %s132, 8
      %s134 = scalar_lea.vmem %s2, %s133
      %s135 = smul.u32 8, %s13
      %p136 = scmp.lt.s32.totalorder %s135, 15
      %s137 = scalar_select %p136, %s135, 15
      %s138 = smul.addr %s137, 8
      %s139 = scalar_lea.vmem %s0, %s138
      %s140 = smul.u32 8, %s13
      %s141 = smul.u32 8, %s13
      %p142 = scmp.lt.s32.totalorder %s141, 15
      %s143 = scalar_select %p142, %s141, 15
      %s144 = smul.addr %s143, 8
      %s145 = scalar_lea.vmem %s2, %s144
      %s146 = smul.u32 8, %s13
      %v148 = vld [vmem:[%s139] sm:$0xff]
      %v149 = vld [vmem:[%s139 + $0x8] sm:$0xff]
      %v150 = vld [vmem:[%s139 + $0x10] sm:$0xff]
      %v151 = vld [vmem:[%s139 + $0x18] sm:$0xff]
      %v152 = vld [vmem:[%s139 + $0x20] sm:$0xff]
      %v153 = vld [vmem:[%s139 + $0x28] sm:$0xff]
      %v154 = vld [vmem:[%s139 + $0x30] sm:$0xff]
      %v155 = vld [vmem:[%s139 + $0x38] sm:$0xff]
      %v156 = vpack.c.bf16 %v149, %v148
      %v157 = vpack.c.bf16 %v151, %v150
      %v158 = vpack.c.bf16 %v153, %v152
      %v159 = vpack.c.bf16 %v155, %v154
      %v160 = vld [vmem:[%s1] sm:$0xff]
      %v161 = vld [vmem:[%s1 + $0x8] sm:$0xff]
      %v162 = vpack.c.bf16 %v161, %v160
      %vm163 = vcmask 130048
      %v165 = vsel %vm163, %v156, 0
      %v168 = vsel %vm163, %v157, 0
      %v171 = vsel %vm163, %v158, 0
      %v174 = vsel %vm163, %v159, 0
      %176 = vmatprep.subr.bf16.mxu0 0
      %177 = vmatpush1.bf16.msra.mxu0 0
      %178 = vmatprep.subr.bf16.mxu0 0
      %179 = vmatpush1.bf16.msra.mxu0 0
      %180 = vmatprep.subr.bf16.mxu0 0
      %181 = vmatpush1.bf16.msra.mxu0 0
      %182 = vmatprep.subr.bf16.mxu0 0
      %183 = vmatpush1.bf16.msra.mxu0 0
      %184 = vmatprep.subr.bf16.mxu0 0
      %185 = vmatpush1.bf16.msra.mxu0 0
      %186 = vmatprep.subr.bf16.mxu0 0
      %187 = vmatpush1.bf16.msra.mxu0 0
      %188 = vmatprep.subr.bf16.mxu0 0
      %189 = vmatpush1.bf16.msra.mxu0 0
      %190 = vmatprep.subr.bf16.mxu0 0
      %191 = vmatpush1.bf16.msra.mxu0 %v162
      %192 = vmatprep.subr.bf16.mxu0 0
      %193 = vmatpush2.bf16.msra.mxu0 0
      %194 = vmatprep.subr.bf16.mxu0 0
      %195 = vmatpush2.bf16.msra.mxu0 0
      %196 = vmatprep.subr.bf16.mxu0 0
      %197 = vmatpush2.bf16.msra.mxu0 0
      %198 = vmatprep.subr.bf16.mxu0 0
      %199 = vmatpush2.bf16.msra.mxu0 0
      %200 = vmatprep.subr.bf16.mxu0 0
      %201 = vmatpush2.bf16.msra.mxu0 0
      %202 = vmatprep.subr.bf16.mxu0 0
      %203 = vmatpush2.bf16.msra.mxu0 0
      %204 = vmatprep.subr.bf16.mxu0 0
      %205 = vmatpush2.bf16.msra.mxu0 0
      %206 = vmatprep.subr.bf16.mxu0 0
      %207 = vmatpush2.bf16.msra.mxu0 0
      %208 = vmatprep.mubr.bf16.mxu0 0
      %209 = vmatmul.mubr.bf16.gmra.mxu0 %v165
      %v210 = vpop.f32.mrf.mxu0
      %v211 = vadd.f32 0.0, %v210
      %v212 = vpop.f32.mrf.mxu0
      %v213 = vpop.f32.mrf.mxu0
      %v214 = vadd.f32 0.0, %v213
      %v215 = vpop.f32.mrf.mxu0
      %216 = vmatprep.mubr.bf16.mxu0 0
      %217 = vmatmul.mubr.bf16.gmra.mxu0 %v168
      %v218 = vpop.f32.mrf.mxu0
      %v219 = vadd.f32 0.0, %v218
      %v220 = vpop.f32.mrf.mxu0
      %v221 = vpop.f32.mrf.mxu0
      %v222 = vadd.f32 0.0, %v221
      %v223 = vpop.f32.mrf.mxu0
      %224 = vmatprep.mubr.bf16.mxu0 0
      %225 = vmatmul.mubr.bf16.gmra.mxu0 %v171
      %v226 = vpop.f32.mrf.mxu0
      %v227 = vadd.f32 0.0, %v226
      %v228 = vpop.f32.mrf.mxu0
      %v229 = vpop.f32.mrf.mxu0
      %v230 = vadd.f32 0.0, %v229
      %v231 = vpop.f32.mrf.mxu0
      %232 = vmatprep.mubr.bf16.mxu0 0
      %233 = vmatmul.mubr.bf16.gmra.mxu0 %v174
      %v234 = vpop.f32.mrf.mxu0
      %v235 = vadd.f32 0.0, %v234
      %v236 = vpop.f32.mrf.mxu0
      %v237 = vpop.f32.mrf.mxu0
      %v238 = vadd.f32 0.0, %v237
      %v239 = vpop.f32.mrf.mxu0
      %240 = vdwg.mxu0
      %vm241 = vcmask 523264
      %242 = vst.msk [vmem:[%s145] sm:$0xff] %vm241, %v211
      %243 = vst.msk [vmem:[%s145 + $0x8] sm:$0xff] %vm241, %v214
      %244 = vst.msk [vmem:[%s145 + $0x10] sm:$0xff] %vm241, %v219
      %245 = vst.msk [vmem:[%s145 + $0x18] sm:$0xff] %vm241, %v222
      %246 = vst.msk [vmem:[%s145 + $0x20] sm:$0xff] %vm241, %v227
      %247 = vst.msk [vmem:[%s145 + $0x28] sm:$0xff] %vm241, %v230
      %248 = vst.msk [vmem:[%s145 + $0x30] sm:$0xff] %vm241, %v235
      %249 = vst.msk [vmem:[%s145 + $0x38] sm:$0xff] %vm241, %v238
      %s250 = smul.u32 8, %s13
      %p251 = scmp.lt.s32.totalorder %s250, 15
      %s252 = scalar_select %p251, %s250, 15
      %s253 = smul.addr %s252, 8
      %s254 = scalar_lea.vmem %s2, %s253
      // Predicated region
      $region29: #{tpu_custom_call.1} parent=27 // pred_check
        %p255 = pneg %p78
      $region30: #{tpu_custom_call.1} parent=27 // pred_check_branch
        %257 = sbr.rel (%p255) target = $region32
      $region31: #{tpu_custom_call.1} parent=27 // pred_region
        %s258 = smul.u32 8, %s13
      $region32: #{tpu_custom_call.1} parent=27 // pred_fallthru
        _
    $region28: #{tpu_custom_call.1} parent=5 // pred_fallthru
      _
    %p259 = scmp.le.s32.totalorder 2, %s8
    // Predicated region
    $region33: #{tpu_custom_call.1} parent=5 // pred_check
      %p260 = pneg %p259
    $region34: #{tpu_custom_call.1} parent=5 // pred_check_branch
      %262 = sbr.rel (%p260) target = $region36
    $region35: #{tpu_custom_call.1} parent=5 // pred_region
      %s263 = ssub.s32 %s8, 2
      // Predicated region
      $region37: #{tpu_custom_call.1} parent=35 // pred_check
        %p264 = pneg %p84
      $region38: #{tpu_custom_call.1} parent=35 // pred_check_branch
        %266 = sbr.rel (%p264) target = $region40
      $region39: #{tpu_custom_call.1} parent=35 // pred_region
        %s267 = smul.u32 8, %s14
        %p268 = scmp.lt.s32.totalorder %s267, 15
        %s269 = scalar_select %p268, %s267, 15
        %s270 = smul.addr %s269, 8
        %s271 = scalar_lea.vmem %s2, %s270
      $region40: #{tpu_custom_call.1} parent=35 // pred_fallthru
        _
    $region36: #{tpu_custom_call.1} parent=5 // pred_fallthru
      _
  $region6: #{tpu_custom_call.1} parent=0 // loop_footer
    %s12 = sadd.s32 1, %s8
  $region7: #{tpu_custom_call.1} parent=0 // loop_footer_branch
    %7 = sbr.rel target = $region3
  $region8: #{tpu_custom_call.1} parent=0 // loop_exit
    _

</llo_original>
